<compile_context>
chip_gen: v6e
topology: v6e:2x2x1
jax: 0.10.0
libtpu: 0.0.40
codegen_flags: <defaults>
</compile_context>

<pallas_src>
import jax
import jax.numpy as jnp
from jax import lax
from jax.experimental import pallas as pl
from jax.experimental.pallas import tpu as pltpu


# ----------------------------------------------------------------------------- kernels

def _score_table_kernel(stim_ref, names_ref,
                        kw1_ref, kb1_ref, kw2_ref, kb2_ref,
                        vw2t_ref, vb2_ref, vtab_ref,
                        out_ref):
    """Small-table path: embed gather fused away.

    stim_ref : (TB, H)  bf16   stimulus rows for this batch tile
    names_ref: (TB, JK) int32  candidate-action ids (nameMap resolved)
    vtab_ref : (H, E)   bf16   relu(embed @ vw1 + vb1).T, resident in VMEM
    out_ref  : (JK, TB) f32    logits, transposed so TB rides the 128-lane axis
    """
    TB = stim_ref.shape[0]
    JK = out_ref.shape[0]
    E = vtab_ref.shape[1]
    f32 = jnp.float32
    bf = kw1_ref.dtype

    # key MLP: Linear -> ReLU -> Linear (bf16 MXU, f32 accumulation + f32 bias)
    k = jnp.dot(stim_ref[...].astype(bf), kw1_ref[...],
                preferred_element_type=f32) + kb1_ref[...]
    k = jnp.maximum(k, 0.0)
    k = jnp.dot(k.astype(bf), kw2_ref[...],
                preferred_element_type=f32) + kb2_ref[...]                     # (TB, H)

    # second val layer folded onto the key side:  out = relu_v1 . k2 + k . vb2
    kvb2 = jnp.sum(k * vb2_ref[...], axis=-1, keepdims=True)                   # (TB, 1)
    k2 = jnp.dot(k.astype(bf), vw2t_ref[...], preferred_element_type=f32)      # (TB, H)

    # score every table entry once: S[b, e] = k2[b, :] . relu_v1_tab[e, :]
    S = jnp.dot(k2.astype(bf), vtab_ref[...], preferred_element_type=f32)      # (TB, E)

    names = names_ref[...]                                                     # (TB, JK)
    eidx = lax.broadcasted_iota(jnp.int32, (TB, E), 1)
    cols = []
    for j in range(JK):                       # JK is small (J*K); fully unrolled
        onehot = names[:, j:j + 1] == eidx                                     # (TB, E)
        sj = jnp.sum(jnp.where(onehot, S, 0.0), axis=-1, keepdims=True)        # (TB, 1)
        cols.append(sj + kvb2)
    scores = jnp.concatenate(cols, axis=-1)                                    # (TB, JK)
    out_ref[...] = scores.T.astype(out_ref.dtype)


def _score_gather_kernel(stim_ref, targs_ref,
                         kw1_ref, kb1_ref, kw2_ref, kb2_ref,
                         vw1_ref, vb1_ref, vw2t_ref, vb2_ref,
                         out_ref):
    """Large-table fallback: pre-gathered targs, laid out (JK, TB, H).

    stim_ref : (TB, H)      bf16
    targs_ref: (JK, TB, H)  bf16   embed[names], j-major so each slice is contiguous
    out_ref  : (JK, TB)     f32
    """
    JK = out_ref.shape[0]
    f32 = jnp.float32
    bf = kw1_ref.dtype

    k = jnp.dot(stim_ref[...].astype(bf), kw1_ref[...],
                preferred_element_type=f32) + kb1_ref[...]
    k = jnp.maximum(k, 0.0)
    k = jnp.dot(k.astype(bf), kw2_ref[...],
                preferred_element_type=f32) + kb2_ref[...]                     # (TB, H)

    kvb2 = jnp.sum(k * vb2_ref[...], axis=-1, keepdims=True)                   # (TB, 1)
    k2 = jnp.dot(k.astype(bf), vw2t_ref[...], preferred_element_type=f32)      # (TB, H)

    cols = []
    for j in range(JK):                       # caps live intermediates at (TB, H)
        v1 = jnp.dot(targs_ref[j].astype(bf), vw1_ref[...],
                     preferred_element_type=f32) + vb1_ref[...]
        v1 = jnp.maximum(v1, 0.0)                                              # (TB, H)
        sj = jnp.sum(v1 * k2, axis=-1, keepdims=True)                          # (TB, 1)
        cols.append(sj + kvb2)
    scores = jnp.concatenate(cols, axis=-1)                                    # (TB, JK)
    out_ref[...] = scores.T.astype(out_ref.dtype)


# ----------------------------------------------------------------------------- wrapper

def _tpu_vmem_capacity_bytes():
    try:
        return int(pltpu.get_tpu_info().vmem_capacity_bytes)
    except Exception:
        return 64 * 2 ** 20          # conservative default (v7x-class per-core VMEM)


def _pick_batch_tile(B):
    # 256 rows/step fills the 256-wide MXU on v6e; chips with only 64 MiB VMEM and
    # 2 TensorCores (v7x) prefer 128 so mid-sized batches still shard across cores.
    tb = 256
    if _tpu_vmem_capacity_bytes() <= 64 * 2 ** 20:
        tb = 128
    if B < tb:
        tb = max(8, ((B + 7) // 8) * 8)
    return tb


def _pick_vmem_limit_bytes():
    cap = _tpu_vmem_capacity_bytes()
    return int(min(cap * 3 // 4, 96 * 2 ** 20))


def net_tree_buffered(stim, embed, atn_names, params, *, force_path=None):
    """NetTree.buffered: (stim, embed table, nameMap-resolved ids) -> (None, logits)."""
    B, H = stim.shape
    _, J, K = atn_names.shape
    JK = J * K
    E = embed.shape[0]
    kw1, kb1, kw2, kb2, vw1, vb1, vw2, vb2 = params

    bf, f32 = jnp.bfloat16, jnp.float32
    kw1b, kw2b, vw1b = kw1.astype(bf), kw2.astype(bf), vw1.astype(bf)
    vw2t = vw2.T.astype(bf)                       # pre-transposed: k2 = k @ vw2.T
    kb1f, kb2f = kb1.astype(f32), kb2.astype(f32)
    vb1f, vb2f = vb1.astype(f32), vb2.astype(f32)
    embed_b = embed.astype(bf)
    stim_b = stim.astype(bf)
    names2 = atn_names.reshape(B, JK).astype(jnp.int32)

    TB = _pick_batch_tile(B)
    nsteps = pl.cdiv(B, TB)                       # partial last block is fine; rows are independent

    if force_path is None:
        use_table = (E * H * 2 <= 4 * 2 ** 20) and (E <= JK * H)
    else:
        use_table = (force_path == "table")

    w_spec = pl.BlockSpec((H, H), lambda i: (0, 0))     # resident across grid steps
    b_spec = pl.BlockSpec((1, H), lambda i: (0, 0))
    stim_spec = pl.BlockSpec((TB, H), lambda i: (i, 0))
    out_spec = pl.BlockSpec((JK, TB), lambda i: (0, i))  # big batch dim on the lane axis
    out_shape = jax.ShapeDtypeStruct((JK, nsteps * TB), f32)
    cparams = pltpu.CompilerParams(
        dimension_semantics=("parallel",),
        vmem_limit_bytes=_pick_vmem_limit_bytes(),
    )

    if use_table:
        # Precompute the first val layer once over the E-row table (tiny): stays in VMEM.
        v1_tab = jnp.maximum(
            jnp.dot(embed_b, vw1b, preferred_element_type=f32) + vb1f, 0.0)
        vtab_t = v1_tab.T.astype(bf)                                        # (H, E)
        logits_t = pl.pallas_call(
            _score_table_kernel,
            out_shape=out_shape,
            grid_spec=pltpu.PrefetchScalarGridSpec(
                num_scalar_prefetch=0,
                grid=(nsteps,),
                in_specs=[
                    stim_spec,
                    pl.BlockSpec((TB, JK), lambda i: (i, 0)),               # names tile
                    w_spec, b_spec, w_spec, b_spec,                         # key MLP
                    w_spec, b_spec,                                         # vw2.T, vb2
                    pl.BlockSpec((H, E), lambda i: (0, 0)),                 # val1 table
                ],
                out_specs=out_spec,
            ),
            compiler_params=cparams,
        )(stim_b, names2, kw1b, kb1f, kw2b, kb2f, vw2t, vb2f, vtab_t)
    else:
        # Gather path: embed[names] laid out (JK, B, H) so each j slice is contiguous.
        targs = embed_b[names2.T.reshape(-1)].reshape(JK, B, H)
        logits_t = pl.pallas_call(
            _score_gather_kernel,
            out_shape=out_shape,
            grid_spec=pltpu.PrefetchScalarGridSpec(
                num_scalar_prefetch=0,
                grid=(nsteps,),
                in_specs=[
                    stim_spec,
                    pl.BlockSpec((JK, TB, H), lambda i: (0, i, 0)),         # targs tile
                    w_spec, b_spec, w_spec, b_spec,                         # key MLP
                    w_spec, b_spec, w_spec, b_spec,                         # val MLP
                ],
                out_specs=out_spec,
            ),
            compiler_params=cparams,
        )(stim_b, targs, kw1b, kb1f, kw2b, kb2f, vw1b, vb1f, vw2t, vb2f)

    # Glue: drop padded columns, transpose back, view as (B, J, K).
    outs = logits_t[:, :B].T.reshape(B, J, K)
    # TODO(synk): functional.classify (Categorical sampling) and Packet/Dynamic action-tree
    # traversal on the `leaves` path are Python dict/control-flow bookkeeping with no Pallas
    # equivalent; the buffered path discards them and returns (None, logits).
    return None, outs


# ----------------------------------------------------------------------------- reference

def _reference(stim, embed, atn_names, params):
    """Plain-JAX f32 reference of the same forward pass."""
    kw1, kb1, kw2, kb2, vw1, vb1, vw2, vb2 = params
    B, H = stim.shape
    _, J, K = atn_names.shape
    targs = embed[atn_names.reshape(-1)].reshape(B, J, K, H).astype(jnp.float32)
    stim = stim.astype(jnp.float32)
    k = jnp.maximum(stim @ kw1 + kb1, 0.0) @ kw2 + kb2            # (B, H)
    v = jnp.maximum(targs @ vw1 + vb1, 0.0) @ vw2 + vb2           # (B, J, K, H)
    return jnp.sum(k[:, None, None, :] * v, axis=-1)              # (B, J, K)


def init_params(key, h):
    ks = jax.random.split(key, 4)
    scale = 1.0 / jnp.sqrt(h)
    kw1 = jax.random.normal(ks[0], (h, h), jnp.float32) * scale
    kw2 = jax.random.normal(ks[1], (h, h), jnp.float32) * scale
    vw1 = jax.random.normal(ks[2], (h, h), jnp.float32) * scale
    vw2 = jax.random.normal(ks[3], (h, h), jnp.float32) * scale
    kb1 = jnp.zeros((1, h), jnp.float32)
    kb2 = jnp.full((1, h), 0.01, jnp.float32)
    vb1 = jnp.zeros((1, h), jnp.float32)
    vb2 = jnp.full((1, h), 0.01, jnp.float32)
    return (kw1, kb1, kw2, kb2, vw1, vb1, vw2, vb2)


if __name__ == "__main__":
    B, J, K, H, E = 2, 2, 4, 32, 16   # batch, atn groups, candidates/group, HIDDEN, embed rows

    key = jax.random.PRNGKey(0)
    k_stim, k_embed, k_names, k_params = jax.random.split(key, 4)

    stim = jax.random.normal(k_stim, (B, H), jnp.float32)
    embed = jax.random.normal(k_embed, (E, H), jnp.float32)
    atn_names = jax.random.randint(k_names, (B, J, K), 0, E, jnp.int32)
    params = init_params(k_params, H)

    ref = _reference(stim, embed, atn_names, params)
    ref_scale = jnp.max(jnp.abs(ref))

    # Exercise both the fused-gather ("table") path and the large-table fallback ("gather").
    for path in ("table", "gather"):
        _, outs = net_tree_buffered(stim, embed, atn_names, params, force_path=path)
        outs = jax.block_until_ready(outs)
        assert outs.shape == (B, J, K), (path, outs.shape)
        max_err = jnp.max(jnp.abs(outs - ref))
        assert max_err <= 5e-2 * ref_scale + 1e-3, (path, float(max_err), float(ref_scale))

    print("KERNEL_OK")
</pallas_src>

<mosaic_0001>
module attributes {stable_mosaic.version = 11 : i64} {
  func.func @_score_table_kernel(%arg0: i32, %arg1: memref<8x32xbf16, #tpu.memory_space<vmem>>, %arg2: memref<8x8xi32, #tpu.memory_space<vmem>>, %arg3: memref<32x32xbf16, #tpu.memory_space<vmem>>, %arg4: memref<1x32xf32, #tpu.memory_space<vmem>>, %arg5: memref<32x32xbf16, #tpu.memory_space<vmem>>, %arg6: memref<1x32xf32, #tpu.memory_space<vmem>>, %arg7: memref<32x32xbf16, #tpu.memory_space<vmem>>, %arg8: memref<1x32xf32, #tpu.memory_space<vmem>>, %arg9: memref<32x16xbf16, #tpu.memory_space<vmem>>, %arg10: memref<8x8xf32, #tpu.memory_space<vmem>>) attributes {dimension_semantics = [#tpu.dimension_semantics<parallel>], iteration_bounds = array<i64: 1>, scalar_prefetch = 0 : i64, scratch_operands = 0 : i64, tpu.core_type = #tpu.core_type<tc>, window_params = [{transform_indices = @transform_0, window_bounds = array<i64: 8, 32>}, {transform_indices = @transform_1, window_bounds = array<i64: 8, 8>}, {pipeline_mode = #tpu.pipeline_mode<synchronous>, transform_indices = @transform_2, window_bounds = array<i64: 32, 32>}, {pipeline_mode = #tpu.pipeline_mode<synchronous>, transform_indices = @transform_3, window_bounds = array<i64: 1, 32>}, {pipeline_mode = #tpu.pipeline_mode<synchronous>, transform_indices = @transform_4, window_bounds = array<i64: 32, 32>}, {pipeline_mode = #tpu.pipeline_mode<synchronous>, transform_indices = @transform_5, window_bounds = array<i64: 1, 32>}, {pipeline_mode = #tpu.pipeline_mode<synchronous>, transform_indices = @transform_6, window_bounds = array<i64: 32, 32>}, {pipeline_mode = #tpu.pipeline_mode<synchronous>, transform_indices = @transform_7, window_bounds = array<i64: 1, 32>}, {pipeline_mode = #tpu.pipeline_mode<synchronous>, transform_indices = @transform_8, window_bounds = array<i64: 32, 16>}, {transform_indices = @transform_9, window_bounds = array<i64: 8, 8>}]} {
    %c0 = arith.constant 0 : index
    %c0_0 = arith.constant 0 : index
    %0 = vector.load %arg1[%c0, %c0_0] : memref<8x32xbf16, #tpu.memory_space<vmem>>, vector<8x32xbf16>
    %c0_1 = arith.constant 0 : index
    %c0_2 = arith.constant 0 : index
    %1 = vector.load %arg3[%c0_1, %c0_2] : memref<32x32xbf16, #tpu.memory_space<vmem>>, vector<32x32xbf16>
    %cst = arith.constant dense<0.000000e+00> : vector<8x32xf32>
    %2 = tpu.matmul %0, %1, %cst {dimension_numbers = #tpu.dot_dimension_numbers<[1], [0], [0], [1], [0, 0, 1, 1], [], []>} : vector<8x32xbf16>, vector<32x32xbf16>, vector<8x32xf32> -> vector<8x32xf32>
    %c0_3 = arith.constant 0 : index
    %c0_4 = arith.constant 0 : index
    %3 = vector.load %arg4[%c0_3, %c0_4] : memref<1x32xf32, #tpu.memory_space<vmem>>, vector<1x32xf32>
    %4 = vector.broadcast %3 : vector<1x32xf32> to vector<8x32xf32>
    %5 = arith.addf %2, %4 : vector<8x32xf32>
    %cst_5 = arith.constant 0.000000e+00 : f32
    %6 = vector.broadcast %cst_5 : f32 to vector<8x32xf32>
    %7 = arith.maximumf %5, %6 : vector<8x32xf32>
    %8 = arith.truncf %7 : vector<8x32xf32> to vector<8x32xbf16>
    %c0_6 = arith.constant 0 : index
    %c0_7 = arith.constant 0 : index
    %9 = vector.load %arg5[%c0_6, %c0_7] : memref<32x32xbf16, #tpu.memory_space<vmem>>, vector<32x32xbf16>
    %cst_8 = arith.constant dense<0.000000e+00> : vector<8x32xf32>
    %10 = tpu.matmul %8, %9, %cst_8 {dimension_numbers = #tpu.dot_dimension_numbers<[1], [0], [0], [1], [0, 0, 1, 1], [], []>} : vector<8x32xbf16>, vector<32x32xbf16>, vector<8x32xf32> -> vector<8x32xf32>
    %c0_9 = arith.constant 0 : index
    %c0_10 = arith.constant 0 : index
    %11 = vector.load %arg6[%c0_9, %c0_10] : memref<1x32xf32, #tpu.memory_space<vmem>>, vector<1x32xf32>
    %12 = vector.broadcast %11 : vector<1x32xf32> to vector<8x32xf32>
    %13 = arith.addf %10, %12 : vector<8x32xf32>
    %c0_11 = arith.constant 0 : index
    %c0_12 = arith.constant 0 : index
    %14 = vector.load %arg8[%c0_11, %c0_12] : memref<1x32xf32, #tpu.memory_space<vmem>>, vector<1x32xf32>
    %15 = vector.broadcast %14 : vector<1x32xf32> to vector<8x32xf32>
    %16 = arith.mulf %13, %15 : vector<8x32xf32>
    %cst_13 = arith.constant dense<0.000000e+00> : vector<8xf32>
    %17 = vector.multi_reduction <add>, %16, %cst_13 [1] : vector<8x32xf32> to vector<8xf32>
    %18 = vector.shape_cast %17 : vector<8xf32> to vector<8x1xf32>
    %19 = arith.truncf %13 : vector<8x32xf32> to vector<8x32xbf16>
    %c0_14 = arith.constant 0 : index
    %c0_15 = arith.constant 0 : index
    %20 = vector.load %arg7[%c0_14, %c0_15] : memref<32x32xbf16, #tpu.memory_space<vmem>>, vector<32x32xbf16>
    %cst_16 = arith.constant dense<0.000000e+00> : vector<8x32xf32>
    %21 = tpu.matmul %19, %20, %cst_16 {dimension_numbers = #tpu.dot_dimension_numbers<[1], [0], [0], [1], [0, 0, 1, 1], [], []>} : vector<8x32xbf16>, vector<32x32xbf16>, vector<8x32xf32> -> vector<8x32xf32>
    %22 = arith.truncf %21 : vector<8x32xf32> to vector<8x32xbf16>
    %c0_17 = arith.constant 0 : index
    %c0_18 = arith.constant 0 : index
    %23 = vector.load %arg9[%c0_17, %c0_18] : memref<32x16xbf16, #tpu.memory_space<vmem>>, vector<32x16xbf16>
    %cst_19 = arith.constant dense<0.000000e+00> : vector<8x16xf32>
    %24 = tpu.matmul %22, %23, %cst_19 {dimension_numbers = #tpu.dot_dimension_numbers<[1], [0], [0], [1], [0, 0, 1, 1], [], []>} : vector<8x32xbf16>, vector<32x16xbf16>, vector<8x16xf32> -> vector<8x16xf32>
    %c0_20 = arith.constant 0 : index
    %c0_21 = arith.constant 0 : index
    %25 = vector.load %arg2[%c0_20, %c0_21] : memref<8x8xi32, #tpu.memory_space<vmem>>, vector<8x8xi32>
    %26 = tpu.iota {dimensions = array<i32: 1>} : vector<8x16xi32>
    %27 = vector.extract_strided_slice %25 {offsets = [0, 0], sizes = [8, 1], strides = [1, 1]} : vector<8x8xi32> to vector<8x1xi32>
    %28 = vector.broadcast %27 : vector<8x1xi32> to vector<8x16xi32>
    %29 = arith.cmpi eq, %28, %26 : vector<8x16xi32>
    %cst_22 = arith.constant 0.000000e+00 : f32
    %30 = vector.broadcast %cst_22 : f32 to vector<8x16xf32>
    %31 = arith.select %29, %24, %30 : vector<8x16xi1>, vector<8x16xf32>
    %cst_23 = arith.constant dense<0.000000e+00> : vector<8xf32>
    %32 = vector.multi_reduction <add>, %31, %cst_23 [1] : vector<8x16xf32> to vector<8xf32>
    %33 = vector.shape_cast %32 : vector<8xf32> to vector<8x1xf32>
    %34 = arith.addf %33, %18 : vector<8x1xf32>
    %35 = vector.extract_strided_slice %25 {offsets = [0, 1], sizes = [8, 1], strides = [1, 1]} : vector<8x8xi32> to vector<8x1xi32>
    %36 = vector.broadcast %35 : vector<8x1xi32> to vector<8x16xi32>
    %37 = arith.cmpi eq, %36, %26 : vector<8x16xi32>
    %cst_24 = arith.constant 0.000000e+00 : f32
    %38 = vector.broadcast %cst_24 : f32 to vector<8x16xf32>
    %39 = arith.select %37, %24, %38 : vector<8x16xi1>, vector<8x16xf32>
    %cst_25 = arith.constant dense<0.000000e+00> : vector<8xf32>
    %40 = vector.multi_reduction <add>, %39, %cst_25 [1] : vector<8x16xf32> to vector<8xf32>
    %41 = vector.shape_cast %40 : vector<8xf32> to vector<8x1xf32>
    %42 = arith.addf %41, %18 : vector<8x1xf32>
    %43 = vector.extract_strided_slice %25 {offsets = [0, 2], sizes = [8, 1], strides = [1, 1]} : vector<8x8xi32> to vector<8x1xi32>
    %44 = vector.broadcast %43 : vector<8x1xi32> to vector<8x16xi32>
    %45 = arith.cmpi eq, %44, %26 : vector<8x16xi32>
    %cst_26 = arith.constant 0.000000e+00 : f32
    %46 = vector.broadcast %cst_26 : f32 to vector<8x16xf32>
    %47 = arith.select %45, %24, %46 : vector<8x16xi1>, vector<8x16xf32>
    %cst_27 = arith.constant dense<0.000000e+00> : vector<8xf32>
    %48 = vector.multi_reduction <add>, %47, %cst_27 [1] : vector<8x16xf32> to vector<8xf32>
    %49 = vector.shape_cast %48 : vector<8xf32> to vector<8x1xf32>
    %50 = arith.addf %49, %18 : vector<8x1xf32>
    %51 = vector.extract_strided_slice %25 {offsets = [0, 3], sizes = [8, 1], strides = [1, 1]} : vector<8x8xi32> to vector<8x1xi32>
    %52 = vector.broadcast %51 : vector<8x1xi32> to vector<8x16xi32>
    %53 = arith.cmpi eq, %52, %26 : vector<8x16xi32>
    %cst_28 = arith.constant 0.000000e+00 : f32
    %54 = vector.broadcast %cst_28 : f32 to vector<8x16xf32>
    %55 = arith.select %53, %24, %54 : vector<8x16xi1>, vector<8x16xf32>
    %cst_29 = arith.constant dense<0.000000e+00> : vector<8xf32>
    %56 = vector.multi_reduction <add>, %55, %cst_29 [1] : vector<8x16xf32> to vector<8xf32>
    %57 = vector.shape_cast %56 : vector<8xf32> to vector<8x1xf32>
    %58 = arith.addf %57, %18 : vector<8x1xf32>
    %59 = vector.extract_strided_slice %25 {offsets = [0, 4], sizes = [8, 1], strides = [1, 1]} : vector<8x8xi32> to vector<8x1xi32>
    %60 = vector.broadcast %59 : vector<8x1xi32> to vector<8x16xi32>
    %61 = arith.cmpi eq, %60, %26 : vector<8x16xi32>
    %cst_30 = arith.constant 0.000000e+00 : f32
    %62 = vector.broadcast %cst_30 : f32 to vector<8x16xf32>
    %63 = arith.select %61, %24, %62 : vector<8x16xi1>, vector<8x16xf32>
    %cst_31 = arith.constant dense<0.000000e+00> : vector<8xf32>
    %64 = vector.multi_reduction <add>, %63, %cst_31 [1] : vector<8x16xf32> to vector<8xf32>
    %65 = vector.shape_cast %64 : vector<8xf32> to vector<8x1xf32>
    %66 = arith.addf %65, %18 : vector<8x1xf32>
    %67 = vector.extract_strided_slice %25 {offsets = [0, 5], sizes = [8, 1], strides = [1, 1]} : vector<8x8xi32> to vector<8x1xi32>
    %68 = vector.broadcast %67 : vector<8x1xi32> to vector<8x16xi32>
    %69 = arith.cmpi eq, %68, %26 : vector<8x16xi32>
    %cst_32 = arith.constant 0.000000e+00 : f32
    %70 = vector.broadcast %cst_32 : f32 to vector<8x16xf32>
    %71 = arith.select %69, %24, %70 : vector<8x16xi1>, vector<8x16xf32>
    %cst_33 = arith.constant dense<0.000000e+00> : vector<8xf32>
    %72 = vector.multi_reduction <add>, %71, %cst_33 [1] : vector<8x16xf32> to vector<8xf32>
    %73 = vector.shape_cast %72 : vector<8xf32> to vector<8x1xf32>
    %74 = arith.addf %73, %18 : vector<8x1xf32>
    %75 = vector.extract_strided_slice %25 {offsets = [0, 6], sizes = [8, 1], strides = [1, 1]} : vector<8x8xi32> to vector<8x1xi32>
    %76 = vector.broadcast %75 : vector<8x1xi32> to vector<8x16xi32>
    %77 = arith.cmpi eq, %76, %26 : vector<8x16xi32>
    %cst_34 = arith.constant 0.000000e+00 : f32
    %78 = vector.broadcast %cst_34 : f32 to vector<8x16xf32>
    %79 = arith.select %77, %24, %78 : vector<8x16xi1>, vector<8x16xf32>
    %cst_35 = arith.constant dense<0.000000e+00> : vector<8xf32>
    %80 = vector.multi_reduction <add>, %79, %cst_35 [1] : vector<8x16xf32> to vector<8xf32>
    %81 = vector.shape_cast %80 : vector<8xf32> to vector<8x1xf32>
    %82 = arith.addf %81, %18 : vector<8x1xf32>
    %83 = vector.extract_strided_slice %25 {offsets = [0, 7], sizes = [8, 1], strides = [1, 1]} : vector<8x8xi32> to vector<8x1xi32>
    %84 = vector.broadcast %83 : vector<8x1xi32> to vector<8x16xi32>
    %85 = arith.cmpi eq, %84, %26 : vector<8x16xi32>
    %cst_36 = arith.constant 0.000000e+00 : f32
    %86 = vector.broadcast %cst_36 : f32 to vector<8x16xf32>
    %87 = arith.select %85, %24, %86 : vector<8x16xi1>, vector<8x16xf32>
    %cst_37 = arith.constant dense<0.000000e+00> : vector<8xf32>
    %88 = vector.multi_reduction <add>, %87, %cst_37 [1] : vector<8x16xf32> to vector<8xf32>
    %89 = vector.shape_cast %88 : vector<8xf32> to vector<8x1xf32>
    %90 = arith.addf %89, %18 : vector<8x1xf32>
    %91 = tpu.concatenate %34, %42, %50, %58, %66, %74, %82, %90 in 1 : vector<8x1xf32>, vector<8x1xf32>, vector<8x1xf32>, vector<8x1xf32>, vector<8x1xf32>, vector<8x1xf32>, vector<8x1xf32>, vector<8x1xf32> -> vector<8x8xf32>
    %92 = tpu.transpose %91, [1, 0] : vector<8x8xf32> -> vector<8x8xf32>
    %c0_38 = arith.constant 0 : index
    %c0_39 = arith.constant 0 : index
    %93 = vector.load %arg10[%c0_38, %c0_39] : memref<8x8xf32, #tpu.memory_space<vmem>>, vector<8x8xf32>
    tpu.vector_store %arg10[%c0_38, %c0_39], %92 {strides = array<i32>} : memref<8x8xf32, #tpu.memory_space<vmem>>, vector<8x8xf32>,
    return
  }
  func.func @transform_0(%arg0: i32) -> (i32, i32) {
    %c0_i32 = arith.constant 0 : i32
    %c0_i32_0 = arith.constant 0 : i32
    return %arg0, %c0_i32 : i32, i32
  }
  func.func @transform_1(%arg0: i32) -> (i32, i32) {
    %c0_i32 = arith.constant 0 : i32
    %c0_i32_0 = arith.constant 0 : i32
    return %arg0, %c0_i32 : i32, i32
  }
  func.func @transform_2(%arg0: i32) -> (i32, i32) {
    %c0_i32 = arith.constant 0 : i32
    %c0_i32_0 = arith.constant 0 : i32
    %c0_i32_1 = arith.constant 0 : i32
    return %c0_i32, %c0_i32_0 : i32, i32
  }
  func.func @transform_3(%arg0: i32) -> (i32, i32) {
    %c0_i32 = arith.constant 0 : i32
    %c0_i32_0 = arith.constant 0 : i32
    %c0_i32_1 = arith.constant 0 : i32
    return %c0_i32, %c0_i32_0 : i32, i32
  }
  func.func @transform_4(%arg0: i32) -> (i32, i32) {
    %c0_i32 = arith.constant 0 : i32
    %c0_i32_0 = arith.constant 0 : i32
    %c0_i32_1 = arith.constant 0 : i32
    return %c0_i32, %c0_i32_0 : i32, i32
  }
  func.func @transform_5(%arg0: i32) -> (i32, i32) {
    %c0_i32 = arith.constant 0 : i32
    %c0_i32_0 = arith.constant 0 : i32
    %c0_i32_1 = arith.constant 0 : i32
    return %c0_i32, %c0_i32_0 : i32, i32
  }
  func.func @transform_6(%arg0: i32) -> (i32, i32) {
    %c0_i32 = arith.constant 0 : i32
    %c0_i32_0 = arith.constant 0 : i32
    %c0_i32_1 = arith.constant 0 : i32
    return %c0_i32, %c0_i32_0 : i32, i32
  }
  func.func @transform_7(%arg0: i32) -> (i32, i32) {
    %c0_i32 = arith.constant 0 : i32
    %c0_i32_0 = arith.constant 0 : i32
    %c0_i32_1 = arith.constant 0 : i32
    return %c0_i32, %c0_i32_0 : i32, i32
  }
  func.func @transform_8(%arg0: i32) -> (i32, i32) {
    %c0_i32 = arith.constant 0 : i32
    %c0_i32_0 = arith.constant 0 : i32
    %c0_i32_1 = arith.constant 0 : i32
    return %c0_i32, %c0_i32_0 : i32, i32
  }
  func.func @transform_9(%arg0: i32) -> (i32, i32) {
    %c0_i32 = arith.constant 0 : i32
    %c0_i32_0 = arith.constant 0 : i32
    return %c0_i32, %arg0 : i32, i32
  }
}

</mosaic_0001>

<llo_original>
// kernel: tpu_custom_call.1
$region0: #{tpu_custom_call.1}
  #allocation0 [shape = 'u32[]', space=smem, size = 0x4, offset = 0x4, fixed_abs, tag = 'smem constant byte address 0x4 - core index']
  #allocation1 [shape = 'u32[144,128]{1,0:T(1,128)}', space=vmem, size = 0x12000, scoped, tag = 'internal scratch']
  %s0 = inlined_call_operand.vmem [shape: bf16[2,32], index: 0, kind: input, shape index: {}]
  %s1 = inlined_call_operand.hbm [shape: s32[2,8], index: 1, kind: input, shape index: {}]
  %s2 = inlined_call_operand.vmem [shape: bf16[32,32], index: 2, kind: input, shape index: {}]
  %s3 = inlined_call_operand.hbm [shape: f32[1,32], index: 3, kind: input, shape index: {}]
  %s4 = inlined_call_operand.hbm [shape: bf16[32,32], index: 4, kind: input, shape index: {}]
  %s5 = inlined_call_operand.hbm [shape: f32[1,32], index: 5, kind: input, shape index: {}]
  %s6 = inlined_call_operand.vmem [shape: bf16[32,32], index: 6, kind: input, shape index: {}]
  %s7 = inlined_call_operand.vmem [shape: f32[1,32], index: 7, kind: input, shape index: {}]
  %s8 = inlined_call_operand.vmem [shape: bf16[32,16], index: 8, kind: input, shape index: {}]
  %s9 = inlined_call_operand.hbm [shape: f32[8,8], index: 9, kind: output, shape index: {}]
  %s10 = sld [smem:[#allocation0]]
  $region62: #{tpu_custom_call.1} parent=0
    _
  %s12 = ssub.s32 1, %s10
  %s13 = scalar_select 0, %s12, %s10
  $region1: #{tpu_custom_call.1} parent=0
    #allocation2 [shape = 'u8[4096]{0}', space=vmem, size = 0x1000, scoped, tag = 'input window, operand 1, single buffered']
    #allocation3 [shape = 's32[1]{0}', space=sflag, size = 0x4, scoped, tag = 'scoped memory for tpu_custom_call.1']
    #allocation4 [shape = 's32[1]{0}', space=sflag, size = 0x4, scoped, tag = 'scoped memory for tpu_custom_call.1']
    #allocation5 [shape = 'u8[512]{0}', space=vmem, size = 0x400, scoped, tag = 'input window, operand 3, single buffered']
    #allocation6 [shape = 's32[1]{0}', space=sflag, size = 0x4, scoped, tag = 'scoped memory for tpu_custom_call.1']
    #allocation7 [shape = 'u8[8192]{0}', space=vmem, size = 0x2000, scoped, tag = 'input window, operand 4, single buffered']
    #allocation8 [shape = 'u8[512]{0}', space=vmem, size = 0x400, scoped, tag = 'input window, operand 5, single buffered']
    #allocation9 [shape = 's32[1]{0}', space=sflag, size = 0x4, scoped, tag = 'scoped memory for tpu_custom_call.1']
    #allocation10 [shape = 'u8[4096]{0}', space=vmem, size = 0x1000, scoped, tag = 'output window, operand 0, single buffered']
    %14 = vsyncpa [#allocation3], 0
    %15 = vsyncpa [#allocation6], 0
    %16 = vsyncpa [#allocation9], 0
    %17 = vsyncpa [#allocation4], 0
    // Predicated region
    $region2: #{tpu_custom_call.1} parent=1 // pred_check
      _
    $region3: #{tpu_custom_call.1} parent=1 // pred_check_branch
      %19 = sbr.rel (0) target = $region5
    $region4: #{tpu_custom_call.1} parent=1 // pred_region
      _
    $region5: #{tpu_custom_call.1} parent=1 // pred_fallthru
      _
    // Predicated region
    $region6: #{tpu_custom_call.1} parent=1 // pred_check
      _
    $region7: #{tpu_custom_call.1} parent=1 // pred_check_branch
      %21 = sbr.rel (0) target = $region9
    $region8: #{tpu_custom_call.1} parent=1 // pred_region
      %s23 = ssub.s32 128, 32
      %24 = vsyncadd [#allocation3], %s23
      %s25 = sshll.u32 [#allocation2], 4
      %s26 = int_to_ptr.vmem [resolvable:$true] %s25
      %31 = dma.hbm_to_vmem [thread:$0]  %s1, 32, %s26, [#allocation3], 32, 32, 2
    $region9: #{tpu_custom_call.1} parent=1 // pred_fallthru
      _
    // Predicated region
    $region10: #{tpu_custom_call.1} parent=1 // pred_check
      _
    $region11: #{tpu_custom_call.1} parent=1 // pred_check_branch
      %33 = sbr.rel (0) target = $region13
    $region12: #{tpu_custom_call.1} parent=1 // pred_region
      _
    $region13: #{tpu_custom_call.1} parent=1 // pred_fallthru
      _
    // Predicated region
    $region14: #{tpu_custom_call.1} parent=1 // pred_check
      _
    $region15: #{tpu_custom_call.1} parent=1 // pred_check_branch
      %35 = sbr.rel (0) target = $region17
    $region16: #{tpu_custom_call.1} parent=1 // pred_region
      %s37 = ssub.s32 16, 16
      %38 = vsyncadd [#allocation6], %s37
      %s40 = sshll.u32 [#allocation5], 4
      %s41 = int_to_ptr.vmem [resolvable:$true] %s40
      %43 = dma.hbm_to_vmem [thread:$0]  %s3, 16, %s41, [#allocation6]
    $region17: #{tpu_custom_call.1} parent=1 // pred_fallthru
      _
    // Predicated region
    $region18: #{tpu_custom_call.1} parent=1 // pred_check
      _
    $region19: #{tpu_custom_call.1} parent=1 // pred_check_branch
      %45 = sbr.rel (0) target = $region21
    $region20: #{tpu_custom_call.1} parent=1 // pred_region
      %s47 = ssub.s32 256, 256
      %48 = vsyncadd [#allocation6], %s47
      %s49 = sshll.u32 [#allocation7], 4
      %s50 = int_to_ptr.vmem [resolvable:$true] %s49
      %55 = dma.hbm_to_vmem [thread:$0]  %s4, 256, %s50, [#allocation6], 64, 64, 4
    $region21: #{tpu_custom_call.1} parent=1 // pred_fallthru
      _
    // Predicated region
    $region22: #{tpu_custom_call.1} parent=1 // pred_check
      _
    $region23: #{tpu_custom_call.1} parent=1 // pred_check_branch
      %57 = sbr.rel (0) target = $region25
    $region24: #{tpu_custom_call.1} parent=1 // pred_region
      %s59 = ssub.s32 16, 16
      %60 = vsyncadd [#allocation9], %s59
      %s62 = sshll.u32 [#allocation8], 4
      %s63 = int_to_ptr.vmem [resolvable:$true] %s62
      %65 = dma.hbm_to_vmem [thread:$0]  %s5, 16, %s63, [#allocation9]
    $region25: #{tpu_custom_call.1} parent=1 // pred_fallthru
      _
    // Predicated region
    $region26: #{tpu_custom_call.1} parent=1 // pred_check
      _
    $region27: #{tpu_custom_call.1} parent=1 // pred_check_branch
      %67 = sbr.rel (0) target = $region29
    $region28: #{tpu_custom_call.1} parent=1 // pred_region
      _
    $region29: #{tpu_custom_call.1} parent=1 // pred_fallthru
      _
    // Predicated region
    $region30: #{tpu_custom_call.1} parent=1 // pred_check
      _
    $region31: #{tpu_custom_call.1} parent=1 // pred_check_branch
      %69 = sbr.rel (0) target = $region33
    $region32: #{tpu_custom_call.1} parent=1 // pred_region
      _
    $region33: #{tpu_custom_call.1} parent=1 // pred_fallthru
      _
    // Predicated region
    $region34: #{tpu_custom_call.1} parent=1 // pred_check
      _
    $region35: #{tpu_custom_call.1} parent=1 // pred_check_branch
      %71 = sbr.rel (0) target = $region37
    $region36: #{tpu_custom_call.1} parent=1 // pred_region
      _
    $region37: #{tpu_custom_call.1} parent=1 // pred_fallthru
      _
    // Predicated region
    $region38: #{tpu_custom_call.1} parent=1 // pred_check
      _
    $region39: #{tpu_custom_call.1} parent=1 // pred_check_branch
      %73 = sbr.rel (0) target = $region41
    $region40: #{tpu_custom_call.1} parent=1 // pred_region
      %74 = dma.done [#allocation3], 128
    $region41: #{tpu_custom_call.1} parent=1 // pred_fallthru
      _
    // Predicated region
    $region42: #{tpu_custom_call.1} parent=1 // pred_check
      _
    $region43: #{tpu_custom_call.1} parent=1 // pred_check_branch
      %76 = sbr.rel (0) target = $region45
    $region44: #{tpu_custom_call.1} parent=1 // pred_region
      %77 = dma.done [#allocation6], 16
    $region45: #{tpu_custom_call.1} parent=1 // pred_fallthru
      _
    // Predicated region
    $region46: #{tpu_custom_call.1} parent=1 // pred_check
      _
    $region47: #{tpu_custom_call.1} parent=1 // pred_check_branch
      %79 = sbr.rel (0) target = $region49
    $region48: #{tpu_custom_call.1} parent=1 // pred_region
      %80 = dma.done [#allocation6], 256
    $region49: #{tpu_custom_call.1} parent=1 // pred_fallthru
      _
    // Predicated region
    $region50: #{tpu_custom_call.1} parent=1 // pred_check
      _
    $region51: #{tpu_custom_call.1} parent=1 // pred_check_branch
      %82 = sbr.rel (0) target = $region53
    $region52: #{tpu_custom_call.1} parent=1 // pred_region
      %83 = dma.done [#allocation9], 16
    $region53: #{tpu_custom_call.1} parent=1 // pred_fallthru
      _
    %v85 = vld [vmem:[%s0] sm:$0x1]
    %v86 = vld [vmem:[%s0 + $0x1] sm:$0x1]
    %v87 = vld [vmem:[%s0 + $0x2] sm:$0x1]
    %v88 = vld [vmem:[%s0 + $0x3] sm:$0x1]
    %v89 = vld [vmem:[%s2] sm:$0xf]
    %v90 = vld [vmem:[%s2 + $0x4] sm:$0xf]
    %v91 = vld [vmem:[%s2 + $0x8] sm:$0xf]
    %v92 = vld [vmem:[%s2 + $0xc] sm:$0xf]
    %v93 = vld [vmem:[#allocation5] sm:$0x1]
    %v95 = vlaneseq
    %v96 = vshrl.u32 %v95, 7
    %v97 = vsub.s32 0, %v96
    %v98 = vrot.slane %v93, %v97
    %v104 = vcombine.low %v85, %v86
    %v105 = vcombine.low %v87, %v88
    %v107 = vunpack.c.l.s4 1966171168
    %v108 = vunpack.c.0.s8 %v107
    %v109 = vlaneseq
    %v110 = vshrl.u32 %v109, 7
    %v111 = vsub.s32 %v108, %v110
    %v112 = vrot.slane %v104, %v111
    %v114 = vunpack.c.l.s4 1966171168
    %v115 = vunpack.c.0.s8 %v114
    %v116 = vlaneseq
    %v117 = vshrl.u32 %v116, 7
    %v118 = vsub.s32 %v115, %v117
    %v119 = vrot.slane %v105, %v118
    %v120 = vcombine.low %v112, %v119
    %v122 = vunpack.c.l.s4 1966171168
    %v123 = vunpack.c.0.s8 %v122
    %v124 = vlaneseq
    %v125 = vshrl.u32 %v124, 7
    %v126 = vsub.s32 %v123, %v125
    %v127 = vrot.slane %v120, %v126
    %v132 = vunpack.c.l.b16 %v89
    %v133 = vunpack.c.l.b16 %v90
    %v134 = vunpack.c.l.b16 %v91
    %v135 = vunpack.c.l.b16 %v92
    %v136 = vpack.c.b16 %v133, %v132
    %v137 = vpack.c.b16 %v135, %v134
    %vm140 = vcmask 261120
    %v142 = vsel %vm140, %v127, 0
    %144 = vmatprep.subr.bf16.mxu0 0
    %145 = vmatpush1.bf16.msra.mxu0 0
    %146 = vmatprep.subr.bf16.mxu0 0
    %147 = vmatpush1.bf16.msra.mxu0 0
    %148 = vmatprep.subr.bf16.mxu0 0
    %149 = vmatpush1.bf16.msra.mxu0 0
    %150 = vmatprep.subr.bf16.mxu0 0
    %151 = vmatpush1.bf16.msra.mxu0 0
    %152 = vmatprep.subr.bf16.mxu0 0
    %153 = vmatpush1.bf16.msra.mxu0 0
    %154 = vmatprep.subr.bf16.mxu0 0
    %155 = vmatpush1.bf16.msra.mxu0 0
    %156 = vmatprep.subr.bf16.mxu0 0
    %157 = vmatpush1.bf16.msra.mxu0 %v137
    %158 = vmatprep.subr.bf16.mxu0 0
    %159 = vmatpush1.bf16.msra.mxu0 %v136
    %160 = vmatprep.subr.bf16.mxu0 0
    %161 = vmatpush2.bf16.msra.mxu0 0
    %162 = vmatprep.subr.bf16.mxu0 0
    %163 = vmatpush2.bf16.msra.mxu0 0
    %164 = vmatprep.subr.bf16.mxu0 0
    %165 = vmatpush2.bf16.msra.mxu0 0
    %166 = vmatprep.subr.bf16.mxu0 0
    %167 = vmatpush2.bf16.msra.mxu0 0
    %168 = vmatprep.subr.bf16.mxu0 0
    %169 = vmatpush2.bf16.msra.mxu0 0
    %170 = vmatprep.subr.bf16.mxu0 0
    %171 = vmatpush2.bf16.msra.mxu0 0
    %172 = vmatprep.subr.bf16.mxu0 0
    %173 = vmatpush2.bf16.msra.mxu0 0
    %174 = vmatprep.subr.bf16.mxu0 0
    %175 = vmatpush2.bf16.msra.mxu0 0
    %176 = vmatprep.mubr.bf16.mxu0 0
    %177 = vmatmul.mubr.bf16.gmra.mxu0 %v142
    %v178 = vpop.f32.mrf.mxu0
    %v179 = vadd.f32 %v98, %v178
    %v180 = vpop.f32.mrf.mxu0
    %v181 = vpop.f32.mrf.mxu0
    %v182 = vpop.f32.mrf.mxu0
    %183 = vdwg.mxu0
    %v184 = vmax.f32 %v179, 0.0
    %v185 = vpack.c.bf16 %v184, %v184
    %v186 = vld [vmem:[#allocation7] sm:$0xf]
    %v187 = vld [vmem:[#allocation7 + $0x4] sm:$0xf]
    %v188 = vld [vmem:[#allocation7 + $0x8] sm:$0xf]
    %v189 = vld [vmem:[#allocation7 + $0xc] sm:$0xf]
    %v190 = vld [vmem:[#allocation8] sm:$0x1]
    %v192 = vlaneseq
    %v193 = vshrl.u32 %v192, 7
    %v194 = vsub.s32 0, %v193
    %v195 = vrot.slane %v190, %v194
    %v201 = vunpack.c.l.b16 %v186
    %v202 = vunpack.c.l.b16 %v187
    %v203 = vunpack.c.l.b16 %v188
    %v204 = vunpack.c.l.b16 %v189
    %v205 = vpack.c.b16 %v202, %v201
    %v206 = vpack.c.b16 %v204, %v203
    %v210 = vsel %vm140, %v185, 0
    %212 = vmatprep.subr.bf16.mxu0 0
    %213 = vmatpush1.bf16.msra.mxu0 0
    %214 = vmatprep.subr.bf16.mxu0 0
    %215 = vmatpush1.bf16.msra.mxu0 0
    %216 = vmatprep.subr.bf16.mxu0 0
    %217 = vmatpush1.bf16.msra.mxu0 0
    %218 = vmatprep.subr.bf16.mxu0 0
    %219 = vmatpush1.bf16.msra.mxu0 0
    %220 = vmatprep.subr.bf16.mxu0 0
    %221 = vmatpush1.bf16.msra.mxu0 0
    %222 = vmatprep.subr.bf16.mxu0 0
    %223 = vmatpush1.bf16.msra.mxu0 0
    %224 = vmatprep.subr.bf16.mxu0 0
    %225 = vmatpush1.bf16.msra.mxu0 %v206
    %226 = vmatprep.subr.bf16.mxu0 0
    %227 = vmatpush1.bf16.msra.mxu0 %v205
    %228 = vmatprep.subr.bf16.mxu0 0
    %229 = vmatpush2.bf16.msra.mxu0 0
    %230 = vmatprep.subr.bf16.mxu0 0
    %231 = vmatpush2.bf16.msra.mxu0 0
    %232 = vmatprep.subr.bf16.mxu0 0
    %233 = vmatpush2.bf16.msra.mxu0 0
    %234 = vmatprep.subr.bf16.mxu0 0
    %235 = vmatpush2.bf16.msra.mxu0 0
    %236 = vmatprep.subr.bf16.mxu0 0
    %237 = vmatpush2.bf16.msra.mxu0 0
    %238 = vmatprep.subr.bf16.mxu0 0
    %239 = vmatpush2.bf16.msra.mxu0 0
    %240 = vmatprep.subr.bf16.mxu0 0
    %241 = vmatpush2.bf16.msra.mxu0 0
    %242 = vmatprep.subr.bf16.mxu0 0
    %243 = vmatpush2.bf16.msra.mxu0 0
    %244 = vmatprep.mubr.bf16.mxu0 0
    %245 = vmatmul.mubr.bf16.gmra.mxu0 %v210
    %v246 = vpop.f32.mrf.mxu0
    %v247 = vadd.f32 %v195, %v246
    %v248 = vpop.f32.mrf.mxu0
    %v249 = vpop.f32.mrf.mxu0
    %v250 = vpop.f32.mrf.mxu0
    %251 = vdwg.mxu0
    %v252 = vld [vmem:[%s7] sm:$0x1]
    %v254 = vlaneseq
    %v255 = vshrl.u32 %v254, 7
    %v256 = vsub.s32 0, %v255
    %v257 = vrot.slane %v252, %v256
    %v259 = vmul.f32 %v247, %v257
    %v260 = vsel %vm140, %v259, 0.0
    %261 = vadd.xlane.f32.xlu0 %v260
    %v262 = vpop.xlane.xlu0 %261
    %v263 = vpack.c.bf16 %v247, %v247
    %v264 = vld [vmem:[%s6] sm:$0xf]
    %v265 = vld [vmem:[%s6 + $0x4] sm:$0xf]
    %v266 = vld [vmem:[%s6 + $0x8] sm:$0xf]
    %v267 = vld [vmem:[%s6 + $0xc] sm:$0xf]
    %v272 = vunpack.c.l.b16 %v264
    %v273 = vunpack.c.l.b16 %v265
    %v274 = vunpack.c.l.b16 %v266
    %v275 = vunpack.c.l.b16 %v267
    %v276 = vpack.c.b16 %v273, %v272
    %v277 = vpack.c.b16 %v275, %v274
    %v281 = vsel %vm140, %v263, 0
    %283 = vmatprep.subr.bf16.mxu0 0
    %284 = vmatpush1.bf16.msra.mxu0 0
    %285 = vmatprep.subr.bf16.mxu0 0
    %286 = vmatpush1.bf16.msra.mxu0 0
    %287 = vmatprep.subr.bf16.mxu0 0
    %288 = vmatpush1.bf16.msra.mxu0 0
    %289 = vmatprep.subr.bf16.mxu0 0
    %290 = vmatpush1.bf16.msra.mxu0 0
    %291 = vmatprep.subr.bf16.mxu0 0
    %292 = vmatpush1.bf16.msra.mxu0 0
    %293 = vmatprep.subr.bf16.mxu0 0
    %294 = vmatpush1.bf16.msra.mxu0 0
    %295 = vmatprep.subr.bf16.mxu0 0
    %296 = vmatpush1.bf16.msra.mxu0 %v277
    %297 = vmatprep.subr.bf16.mxu0 0
    %298 = vmatpush1.bf16.msra.mxu0 %v276
    %299 = vmatprep.subr.bf16.mxu0 0
    %300 = vmatpush2.bf16.msra.mxu0 0
    %301 = vmatprep.subr.bf16.mxu0 0
    %302 = vmatpush2.bf16.msra.mxu0 0
    %303 = vmatprep.subr.bf16.mxu0 0
    %304 = vmatpush2.bf16.msra.mxu0 0
    %305 = vmatprep.subr.bf16.mxu0 0
    %306 = vmatpush2.bf16.msra.mxu0 0
    %307 = vmatprep.subr.bf16.mxu0 0
    %308 = vmatpush2.bf16.msra.mxu0 0
    %309 = vmatprep.subr.bf16.mxu0 0
    %310 = vmatpush2.bf16.msra.mxu0 0
    %311 = vmatprep.subr.bf16.mxu0 0
    %312 = vmatpush2.bf16.msra.mxu0 0
    %313 = vmatprep.subr.bf16.mxu0 0
    %314 = vmatpush2.bf16.msra.mxu0 0
    %315 = vmatprep.mubr.bf16.mxu0 0
    %316 = vmatmul.mubr.bf16.gmra.mxu0 %v281
    %v317 = vpop.f32.mrf.mxu0
    %v318 = vadd.f32 0.0, %v317
    %v319 = vpop.f32.mrf.mxu0
    %v320 = vpop.f32.mrf.mxu0
    %v321 = vpop.f32.mrf.mxu0
    %322 = vdwg.mxu0
    %v323 = vpack.c.bf16 %v318, %v318
    %v324 = vld [vmem:[%s8] sm:$0xf]
    %v325 = vld [vmem:[%s8 + $0x4] sm:$0xf]
    %v326 = vld [vmem:[%s8 + $0x8] sm:$0xf]
    %v327 = vld [vmem:[%s8 + $0xc] sm:$0xf]
    %v332 = vunpack.c.l.b16 %v324
    %v333 = vunpack.c.l.b16 %v325
    %v334 = vunpack.c.l.b16 %v326
    %v335 = vunpack.c.l.b16 %v327
    %v336 = vpack.c.b16 %v333, %v332
    %v337 = vpack.c.b16 %v335, %v334
    %v341 = vsel %vm140, %v323, 0
    %343 = vmatprep.subr.bf16.mxu0 0
    %344 = vmatpush1.bf16.msra.mxu0 0
    %345 = vmatprep.subr.bf16.mxu0 0
    %346 = vmatpush1.bf16.msra.mxu0 0
    %347 = vmatprep.subr.bf16.mxu0 0
    %348 = vmatpush1.bf16.msra.mxu0 0
    %349 = vmatprep.subr.bf16.mxu0 0
    %350 = vmatpush1.bf16.msra.mxu0 0
    %351 = vmatprep.subr.bf16.mxu0 0
    %352 = vmatpush1.bf16.msra.mxu0 0
    %353 = vmatprep.subr.bf16.mxu0 0
    %354 = vmatpush1.bf16.msra.mxu0 0
    %355 = vmatprep.subr.bf16.mxu0 0
    %356 = vmatpush1.bf16.msra.mxu0 %v337
    %357 = vmatprep.subr.bf16.mxu0 0
    %358 = vmatpush1.bf16.msra.mxu0 %v336
    %359 = vmatprep.subr.bf16.mxu0 0
    %360 = vmatpush2.bf16.msra.mxu0 0
    %361 = vmatprep.subr.bf16.mxu0 0
    %362 = vmatpush2.bf16.msra.mxu0 0
    %363 = vmatprep.subr.bf16.mxu0 0
    %364 = vmatpush2.bf16.msra.mxu0 0
    %365 = vmatprep.subr.bf16.mxu0 0
    %366 = vmatpush2.bf16.msra.mxu0 0
    %367 = vmatprep.subr.bf16.mxu0 0
    %368 = vmatpush2.bf16.msra.mxu0 0
    %369 = vmatprep.subr.bf16.mxu0 0
    %370 = vmatpush2.bf16.msra.mxu0 0
    %371 = vmatprep.subr.bf16.mxu0 0
    %372 = vmatpush2.bf16.msra.mxu0 0
    %373 = vmatprep.subr.bf16.mxu0 0
    %374 = vmatpush2.bf16.msra.mxu0 0
    %375 = vmatprep.mubr.bf16.mxu0 0
    %376 = vmatmul.mubr.bf16.gmra.mxu0 %v341
    %v377 = vpop.f32.mrf.mxu0
    %v378 = vadd.f32 0.0, %v377
    %v379 = vpop.f32.mrf.mxu0
    %v380 = vpop.f32.mrf.mxu0
    %v381 = vpop.f32.mrf.mxu0
    %382 = vdwg.mxu0
    %v383 = vld [vmem:[#allocation2] sm:$0xff]
    %v384 = vlaneseq
    %v385 = vand.u32 %v384, 127
    %386 = vset.pattern.permute.xlu0 0
    %387 = vperm.xlu0 %386, %v383
    %v388 = vpop.permute.xlu0 %387
    %vm389 = vcmp.eq.s32.totalorder %v388, %v385
    %v390 = vsel %vm389, %v378, 0.0
    %vm391 = vcmask 130048
    %v392 = vsel %vm391, %v390, 0.0
    %393 = vadd.xlane.f32.xlu0 %v392
    %v394 = vpop.xlane.xlu0 %393
    %v395 = vadd.f32 %v394, %v262
    %396 = vset.pattern.permute.xlu0 1
    %397 = vperm.xlu0 %396, %v383
    %v398 = vpop.permute.xlu0 %397
    %vm399 = vcmp.eq.s32.totalorder %v398, %v385
    %v400 = vsel %vm399, %v378, 0.0
    %v401 = vsel %vm391, %v400, 0.0
    %402 = vadd.xlane.f32.xlu0 %v401
    %v403 = vpop.xlane.xlu0 %402
    %v404 = vadd.f32 %v403, %v262
    %405 = vset.pattern.permute.xlu0 2
    %406 = vperm.xlu0 %405, %v383
    %v407 = vpop.permute.xlu0 %406
    %vm408 = vcmp.eq.s32.totalorder %v407, %v385
    %v409 = vsel %vm408, %v378, 0.0
    %v410 = vsel %vm391, %v409, 0.0
    %411 = vadd.xlane.f32.xlu0 %v410
    %v412 = vpop.xlane.xlu0 %411
    %v413 = vadd.f32 %v412, %v262
    %414 = vset.pattern.permute.xlu0 3
    %415 = vperm.xlu0 %414, %v383
    %v416 = vpop.permute.xlu0 %415
    %vm417 = vcmp.eq.s32.totalorder %v416, %v385
    %v418 = vsel %vm417, %v378, 0.0
    %v419 = vsel %vm391, %v418, 0.0
    %420 = vadd.xlane.f32.xlu0 %v419
    %v421 = vpop.xlane.xlu0 %420
    %v422 = vadd.f32 %v421, %v262
    %423 = vset.pattern.permute.xlu0 4
    %424 = vperm.xlu0 %423, %v383
    %v425 = vpop.permute.xlu0 %424
    %vm426 = vcmp.eq.s32.totalorder %v425, %v385
    %v427 = vsel %vm426, %v378, 0.0
    %v428 = vsel %vm391, %v427, 0.0
    %429 = vadd.xlane.f32.xlu0 %v428
    %v430 = vpop.xlane.xlu0 %429
    %v431 = vadd.f32 %v430, %v262
    %432 = vset.pattern.permute.xlu0 5
    %433 = vperm.xlu0 %432, %v383
    %v434 = vpop.permute.xlu0 %433
    %vm435 = vcmp.eq.s32.totalorder %v434, %v385
    %v436 = vsel %vm435, %v378, 0.0
    %v437 = vsel %vm391, %v436, 0.0
    %438 = vadd.xlane.f32.xlu0 %v437
    %v439 = vpop.xlane.xlu0 %438
    %v440 = vadd.f32 %v439, %v262
    %441 = vset.pattern.permute.xlu0 6
    %442 = vperm.xlu0 %441, %v383
    %v443 = vpop.permute.xlu0 %442
    %vm444 = vcmp.eq.s32.totalorder %v443, %v385
    %v445 = vsel %vm444, %v378, 0.0
    %v446 = vsel %vm391, %v445, 0.0
    %447 = vadd.xlane.f32.xlu0 %v446
    %v448 = vpop.xlane.xlu0 %447
    %v449 = vadd.f32 %v448, %v262
    %450 = vset.pattern.permute.xlu0 7
    %451 = vperm.xlu0 %450, %v383
    %v452 = vpop.permute.xlu0 %451
    %vm453 = vcmp.eq.s32.totalorder %v452, %v385
    %v454 = vsel %vm453, %v378, 0.0
    %v455 = vsel %vm391, %v454, 0.0
    %456 = vadd.xlane.f32.xlu0 %v455
    %v457 = vpop.xlane.xlu0 %456
    %v458 = vadd.f32 %v457, %v262
    %vm459 = vcmask 7168
    %v460 = vsel %vm459, %v395, %v404
    %vm461 = vcmask 15360
    %v462 = vsel %vm461, %v460, %v413
    %vm463 = vcmask 23552
    %v464 = vsel %vm463, %v462, %v422
    %vm465 = vcmask 31744
    %v466 = vsel %vm465, %v464, %v431
    %vm467 = vcmask 39936
    %v468 = vsel %vm467, %v466, %v440
    %vm469 = vcmask 48128
    %v470 = vsel %vm469, %v468, %v449
    %vm471 = vcmask 56320
    %v472 = vsel %vm471, %v470, %v458
    %473 = vxpose.xlu0.b32.start [1/16] %v472, 128
    %474 = vxpose.xlu0.b32.cont [2/16] 0.0, 128
    %475 = vxpose.xlu0.b32.cont [3/16] 0.0, 128
    %476 = vxpose.xlu0.b32.cont [4/16] 0.0, 128
    %477 = vxpose.xlu0.b32.cont [5/16] 0.0, 128
    %478 = vxpose.xlu0.b32.cont [6/16] 0.0, 128
    %479 = vxpose.xlu0.b32.cont [7/16] 0.0, 128
    %480 = vxpose.xlu0.b32.cont [8/16] 0.0, 128
    %481 = vxpose.xlu0.b32.cont [9/16] 0.0, 128
    %482 = vxpose.xlu0.b32.cont [10/16] 0.0, 128
    %483 = vxpose.xlu0.b32.cont [11/16] 0.0, 128
    %484 = vxpose.xlu0.b32.cont [12/16] 0.0, 128
    %485 = vxpose.xlu0.b32.cont [13/16] 0.0, 128
    %486 = vxpose.xlu0.b32.cont [14/16] 0.0, 128
    %487 = vxpose.xlu0.b32.cont [15/16] 0.0, 128
    %488 = vxpose.xlu0.b32.end [16/16] 0.0, 128
    %v489 = vpop.trf.xlu0
    %v490 = vpop.trf.xlu0
    %v491 = vpop.trf.xlu0
    %v492 = vpop.trf.xlu0
    %v493 = vpop.trf.xlu0
    %v494 = vpop.trf.xlu0
    %v495 = vpop.trf.xlu0
    %v496 = vpop.trf.xlu0
    %v497 = vpop.trf.xlu0
    %v498 = vpop.trf.xlu0
    %v499 = vpop.trf.xlu0
    %v500 = vpop.trf.xlu0
    %v501 = vpop.trf.xlu0
    %v502 = vpop.trf.xlu0
    %v503 = vpop.trf.xlu0
    %v504 = vpop.trf.xlu0
    %vm505 = vcmask 64512
    %506 = vst.msk [vmem:[#allocation10] sm:$0xff] %vm505, %v489
    // Predicated region
    $region54: #{tpu_custom_call.1} parent=1 // pred_check
      _
    $region55: #{tpu_custom_call.1} parent=1 // pred_check_branch
      %508 = sbr.rel (0) target = $region57
    $region56: #{tpu_custom_call.1} parent=1 // pred_region
      %s510 = ssub.s32 128, 128
      %511 = vsyncadd [#allocation4], %s510
      %s513 = sshll.u32 [#allocation10], 4
      %s514 = int_to_ptr.vmem [resolvable:$true] %s513
      %516 = dma.vmem_to_hbm [thread:$0]  %s514, 128, %s9, [#allocation4]
    $region57: #{tpu_custom_call.1} parent=1 // pred_fallthru
      _
    // Predicated region
    $region58: #{tpu_custom_call.1} parent=1 // pred_check
      _
    $region59: #{tpu_custom_call.1} parent=1 // pred_check_branch
      %518 = sbr.rel (0) target = $region61
    $region60: #{tpu_custom_call.1} parent=1 // pred_region
      %519 = dma.done [#allocation4], 128
    $region61: #{tpu_custom_call.1} parent=1 // pred_fallthru
      _
    %520 = vsyncpa [#allocation3], 1
    %521 = vsyncpa [#allocation6], 1
    %522 = vsyncpa [#allocation9], 1
    %523 = vsyncpa [#allocation4], 1

</llo_original>
